<compile_context>
chip_gen: v5e
topology: v5e:2x2
jax: 0.10.0
libtpu: 0.0.40
codegen_flags: <defaults>
</compile_context>

<pallas_src>
import jax
import jax.numpy as jnp
import numpy as np
from jax.experimental import pallas as pl
from jax.experimental.pallas import tpu as pltpu


def _round_up(x, m):
    return ((x + m - 1) // m) * m


def _softmax_features(h, approx_recip):
    # softmax over the feature axis, which is axis 0 in the feature-major layout.
    m = jnp.max(h, axis=0, keepdims=True)
    e = jnp.exp(h - m)
    s = jnp.sum(e, axis=0, keepdims=True)
    if approx_recip:
        # EUP reciprocal: separate bundle slot, frees VALU cycles.
        return e * pl.reciprocal(s, approx=True)
    return e / s


def make_net_kernel(activation_lst, prob, n_layers, approx_recip):
    """Fused MLP kernel for one batch tile, feature-major layout.

    Kernel ref order: xT_tile (in_dim, tn), (w0, b0), ..., (w_{L-1}, b_{L-1}), outT_tile
    where w_i is PyTorch-native (out_i, in_i) and b_i is (out_i, 1).
    Computes h = W @ h + b per layer, i.e. the transpose of x @ W^T + b.
    """

    def kernel(*refs):
        x_ref = refs[0]
        o_ref = refs[-1]
        param_refs = refs[1:-1]

        h = x_ref[...].astype(jnp.float32)          # (in_dim, tn)
        for i in range(n_layers):
            w = param_refs[2 * i][...]               # (out_i, in_i)
            b = param_refs[2 * i + 1][...]           # (out_i, 1)
            h = jnp.dot(w, h, preferred_element_type=jnp.float32) + b
            if i < n_layers - 1:                     # hidden-layer activation
                act = activation_lst[i]
                if act == "relu":
                    h = jnp.maximum(h, 0.0)
                elif act == "tanh":
                    h = jnp.tanh(h)
                elif act == "softmax":
                    h = _softmax_features(h, approx_recip)
        if prob:
            h = _softmax_features(h, approx_recip)
        o_ref[...] = h.astype(o_ref.dtype)           # (out_dim, tn), lane-dense store

    return kernel


def _cost_estimate(n_rows, params, activation_lst, prob):
    flops = 0
    trans = 0
    param_bytes = 0
    for i, (w, b) in enumerate(params):
        m, k = w.shape  # (out, in)
        flops += 2 * n_rows * k * m + n_rows * m  # matmul + bias add
        param_bytes += w.size * w.dtype.itemsize + b.size * b.dtype.itemsize
        if i < len(params) - 1:
            act = activation_lst[i]
            if act == "tanh":
                trans += n_rows * m
            elif act == "softmax":
                trans += n_rows * (m + 1)  # exp + reciprocal
    if prob:
        out_dim = params[-1][0].shape[0]
        trans += n_rows * (out_dim + 1)
    in_dim = params[0][0].shape[1]
    out_dim = params[-1][0].shape[0]
    bytes_accessed = n_rows * in_dim * 4 + n_rows * out_dim * 4 + param_bytes
    return pl.CostEstimate(
        flops=int(flops), transcendentals=int(trans), bytes_accessed=int(bytes_accessed)
    )


def net_forward_pallas(tup, params, activation_lst, prob,
                       tile_n=8192, approx_recip=True):
    """Pallas equivalent of Net.forward for the chosen config.

    tup = (t, x); t is ignored (use_embedding=False).
    params: list of (W, b) with W shaped (out, in) [PyTorch native], b shaped (out, 1).
    """
    _t, x = tup  # t unused: use_embedding=False
    # TODO(synk): batch_norm=True (training-mode BatchNorm1d) and use_embedding=True
    #             (nn.Embedding lookup + concat) paths are not wired in for this config.
    n, in_dim = x.shape
    out_dim = params[-1][0].shape[0]
    n_layers = len(params)

    # Batch tile: multiple of 128 (lane axis in feature-major layout), capped at tile_n.
    n_pad128 = _round_up(n, 128)
    tn = min(_round_up(tile_n, 128), n_pad128)
    # v7x has 2 TensorCores: when the batch is large enough, keep >= 2 grid steps so the
    # "parallel" batch axis actually shards work across both cores.
    if n_pad128 >= 512 and tn >= n_pad128:
        tn = _round_up(pl.cdiv(n_pad128, 2), 128)
    n_pad = _round_up(n, tn)

    # Feature-major: (in_dim, n_pad).  Padded zero columns flow through the softmaxes
    # (uniform distributions) and are sliced off afterwards -- semantically safe.
    xT = x.T
    if n_pad != n:
        xT = jnp.pad(xT, ((0, 0), (0, n_pad - n)))

    flat_args = [xT]
    in_specs = [pl.BlockSpec((in_dim, tn), lambda i: (0, i))]
    for w, b in params:
        flat_args.append(w)
        flat_args.append(b)
        # Weights/biases: full-array block, constant index_map -> VMEM-resident, no per-step DMA.
        in_specs.append(pl.BlockSpec(w.shape, lambda i: (0, 0)))
        in_specs.append(pl.BlockSpec(b.shape, lambda i: (0, 0)))

    kernel = make_net_kernel(tuple(activation_lst), prob, n_layers, approx_recip)

    outT = pl.pallas_call(
        kernel,
        out_shape=jax.ShapeDtypeStruct((out_dim, n_pad), jnp.float32),
        grid=(n_pad // tn,),
        in_specs=in_specs,
        out_specs=pl.BlockSpec((out_dim, tn), lambda i: (0, i)),
        compiler_params=pltpu.CompilerParams(
            dimension_semantics=("parallel",),      # v7x: shard batch tiles across both TCs
            vmem_limit_bytes=32 * 1024 * 1024,      # v5e default is 16 MiB; 32 MiB is safe on all chips
        ),
        cost_estimate=_cost_estimate(n_pad, params, activation_lst, prob),
    )(*flat_args)

    out = outT[:, :n].T  # back to (batch, out_dim); layout plumbing outside the kernel
    return out


def net_forward_ref(tup, params, activation_lst, prob):
    """Pure-JAX reference (mirrors the PyTorch forward). W is (out, in), b is (out, 1)."""
    _t, x = tup
    h = x.astype(jnp.float32)
    n_layers = len(params)
    for i in range(n_layers):
        w, b = params[i]
        h = h @ w.T + b.reshape(1, -1)
        if i < n_layers - 1:
            act = activation_lst[i]
            if act == "relu":
                h = jnp.maximum(h, 0.0)
            elif act == "tanh":
                h = jnp.tanh(h)
            elif act == "softmax":
                h = jax.nn.softmax(h, axis=1)
    if prob:
        h = jax.nn.softmax(h, axis=1)
    return h


def init_params(key, input_dim, hidden_dim_lst, output_dim):
    """Deterministic Linear params in PyTorch-native layout: W (out, in), b (out, 1)."""
    dims = [input_dim] + list(hidden_dim_lst) + [output_dim]
    params = []
    for i in range(len(dims) - 1):
        key, kw, kb = jax.random.split(key, 3)
        fan_in = dims[i]
        bound = 1.0 / np.sqrt(fan_in)  # PyTorch-style uniform init bound
        w = jax.random.uniform(kw, (dims[i + 1], dims[i]), jnp.float32, -bound, bound)
        b = jax.random.uniform(kb, (dims[i + 1], 1), jnp.float32, -bound, bound)
        params.append((w, b))
    return params


if __name__ == "__main__":
    # Module config
    input_dim = 16
    hidden_dim_lst = [32, 32, 32]
    activation_lst = ["relu", "tanh", "softmax"]
    output_dim = 4
    prob = True
    batch = 8

    key = jax.random.PRNGKey(0)
    key, kx, kt = jax.random.split(key, 3)
    x = jax.random.normal(kx, (batch, input_dim), jnp.float32)
    t = jax.random.randint(kt, (batch, 1), 0, 1, jnp.int32)  # unused (use_embedding=False)

    params = init_params(key, input_dim, hidden_dim_lst, output_dim)

    ref = jax.block_until_ready(net_forward_ref((t, x), params, activation_lst, prob))

    # Exact-math path: tight tolerance check against the JAX reference.
    out_exact = net_forward_pallas((t, x), params, activation_lst, prob,
                                   approx_recip=False)
    out_exact = jax.block_until_ready(out_exact)
    np.testing.assert_allclose(np.asarray(out_exact), np.asarray(ref),
                               rtol=1e-5, atol=1e-5)

    # Fast path (EUP approx reciprocal in both softmaxes): looser tolerance.
    out_fast = net_forward_pallas((t, x), params, activation_lst, prob,
                                  approx_recip=True)
    out_fast = jax.block_until_ready(out_fast)
    np.testing.assert_allclose(np.asarray(out_fast), np.asarray(ref),
                               rtol=5e-3, atol=5e-3)

    print("KERNEL_OK")
</pallas_src>

<mosaic_0001>
module attributes {stable_mosaic.version = 11 : i64} {
  func.func @kernel(%arg0: i32, %arg1: memref<16x128xf32, #tpu.memory_space<vmem>>, %arg2: memref<32x16xf32, #tpu.memory_space<vmem>>, %arg3: memref<32x1xf32, #tpu.memory_space<vmem>>, %arg4: memref<32x32xf32, #tpu.memory_space<vmem>>, %arg5: memref<32x1xf32, #tpu.memory_space<vmem>>, %arg6: memref<32x32xf32, #tpu.memory_space<vmem>>, %arg7: memref<32x1xf32, #tpu.memory_space<vmem>>, %arg8: memref<4x32xf32, #tpu.memory_space<vmem>>, %arg9: memref<4x1xf32, #tpu.memory_space<vmem>>, %arg10: memref<4x128xf32, #tpu.memory_space<vmem>>) attributes {dimension_semantics = [#tpu.dimension_semantics<parallel>], iteration_bounds = array<i64: 1>, scalar_prefetch = 0 : i64, scratch_operands = 0 : i64, tpu.core_type = #tpu.core_type<tc>, window_params = [{transform_indices = @transform_0, window_bounds = array<i64: 16, 128>}, {pipeline_mode = #tpu.pipeline_mode<synchronous>, transform_indices = @transform_1, window_bounds = array<i64: 32, 16>}, {pipeline_mode = #tpu.pipeline_mode<synchronous>, transform_indices = @transform_2, window_bounds = array<i64: 32, 1>}, {pipeline_mode = #tpu.pipeline_mode<synchronous>, transform_indices = @transform_3, window_bounds = array<i64: 32, 32>}, {pipeline_mode = #tpu.pipeline_mode<synchronous>, transform_indices = @transform_4, window_bounds = array<i64: 32, 1>}, {pipeline_mode = #tpu.pipeline_mode<synchronous>, transform_indices = @transform_5, window_bounds = array<i64: 32, 32>}, {pipeline_mode = #tpu.pipeline_mode<synchronous>, transform_indices = @transform_6, window_bounds = array<i64: 32, 1>}, {pipeline_mode = #tpu.pipeline_mode<synchronous>, transform_indices = @transform_7, window_bounds = array<i64: 4, 32>}, {pipeline_mode = #tpu.pipeline_mode<synchronous>, transform_indices = @transform_8, window_bounds = array<i64: 4, 1>}, {transform_indices = @transform_9, window_bounds = array<i64: 4, 128>}]} {
    %c0 = arith.constant 0 : index
    %c0_0 = arith.constant 0 : index
    %0 = vector.load %arg1[%c0, %c0_0] : memref<16x128xf32, #tpu.memory_space<vmem>>, vector<16x128xf32>
    %c0_1 = arith.constant 0 : index
    %c0_2 = arith.constant 0 : index
    %1 = vector.load %arg2[%c0_1, %c0_2] : memref<32x16xf32, #tpu.memory_space<vmem>>, vector<32x16xf32>
    %c0_3 = arith.constant 0 : index
    %c0_4 = arith.constant 0 : index
    %2 = vector.load %arg3[%c0_3, %c0_4] : memref<32x1xf32, #tpu.memory_space<vmem>>, vector<32x1xf32>
    %cst = arith.constant dense<0.000000e+00> : vector<32x128xf32>
    %3 = tpu.matmul %1, %0, %cst {dimension_numbers = #tpu.dot_dimension_numbers<[1], [0], [0], [1], [0, 0, 1, 1], [], []>} : vector<32x16xf32>, vector<16x128xf32>, vector<32x128xf32> -> vector<32x128xf32>
    %4 = vector.broadcast %2 : vector<32x1xf32> to vector<32x128xf32>
    %5 = arith.addf %3, %4 : vector<32x128xf32>
    %cst_5 = arith.constant 0.000000e+00 : f32
    %6 = vector.broadcast %cst_5 : f32 to vector<32x128xf32>
    %7 = arith.maximumf %5, %6 : vector<32x128xf32>
    %c0_6 = arith.constant 0 : index
    %c0_7 = arith.constant 0 : index
    %8 = vector.load %arg4[%c0_6, %c0_7] : memref<32x32xf32, #tpu.memory_space<vmem>>, vector<32x32xf32>
    %c0_8 = arith.constant 0 : index
    %c0_9 = arith.constant 0 : index
    %9 = vector.load %arg5[%c0_8, %c0_9] : memref<32x1xf32, #tpu.memory_space<vmem>>, vector<32x1xf32>
    %cst_10 = arith.constant dense<0.000000e+00> : vector<32x128xf32>
    %10 = tpu.matmul %8, %7, %cst_10 {dimension_numbers = #tpu.dot_dimension_numbers<[1], [0], [0], [1], [0, 0, 1, 1], [], []>} : vector<32x32xf32>, vector<32x128xf32>, vector<32x128xf32> -> vector<32x128xf32>
    %11 = vector.broadcast %9 : vector<32x1xf32> to vector<32x128xf32>
    %12 = arith.addf %10, %11 : vector<32x128xf32>
    %13 = math.tanh %12 : vector<32x128xf32>
    %c0_11 = arith.constant 0 : index
    %c0_12 = arith.constant 0 : index
    %14 = vector.load %arg6[%c0_11, %c0_12] : memref<32x32xf32, #tpu.memory_space<vmem>>, vector<32x32xf32>
    %c0_13 = arith.constant 0 : index
    %c0_14 = arith.constant 0 : index
    %15 = vector.load %arg7[%c0_13, %c0_14] : memref<32x1xf32, #tpu.memory_space<vmem>>, vector<32x1xf32>
    %cst_15 = arith.constant dense<0.000000e+00> : vector<32x128xf32>
    %16 = tpu.matmul %14, %13, %cst_15 {dimension_numbers = #tpu.dot_dimension_numbers<[1], [0], [0], [1], [0, 0, 1, 1], [], []>} : vector<32x32xf32>, vector<32x128xf32>, vector<32x128xf32> -> vector<32x128xf32>
    %17 = vector.broadcast %15 : vector<32x1xf32> to vector<32x128xf32>
    %18 = arith.addf %16, %17 : vector<32x128xf32>
    %cst_16 = arith.constant dense<0xFF800000> : vector<128xf32>
    %19 = vector.multi_reduction <maximumf>, %18, %cst_16 [0] : vector<32x128xf32> to vector<128xf32>
    %20 = vector.shape_cast %19 : vector<128xf32> to vector<1x128xf32>
    %21 = vector.broadcast %20 : vector<1x128xf32> to vector<32x128xf32>
    %22 = arith.subf %18, %21 : vector<32x128xf32>
    %23 = math.exp %22 : vector<32x128xf32>
    %cst_17 = arith.constant dense<0.000000e+00> : vector<128xf32>
    %24 = vector.multi_reduction <add>, %23, %cst_17 [0] : vector<32x128xf32> to vector<128xf32>
    %25 = vector.shape_cast %24 : vector<128xf32> to vector<1x128xf32>
    %26 = vector.broadcast %25 : vector<1x128xf32> to vector<32x128xf32>
    %27 = arith.divf %23, %26 : vector<32x128xf32>
    %c0_18 = arith.constant 0 : index
    %c0_19 = arith.constant 0 : index
    %28 = vector.load %arg8[%c0_18, %c0_19] : memref<4x32xf32, #tpu.memory_space<vmem>>, vector<4x32xf32>
    %c0_20 = arith.constant 0 : index
    %c0_21 = arith.constant 0 : index
    %29 = vector.load %arg9[%c0_20, %c0_21] : memref<4x1xf32, #tpu.memory_space<vmem>>, vector<4x1xf32>
    %cst_22 = arith.constant dense<0.000000e+00> : vector<4x128xf32>
    %30 = tpu.matmul %28, %27, %cst_22 {dimension_numbers = #tpu.dot_dimension_numbers<[1], [0], [0], [1], [0, 0, 1, 1], [], []>} : vector<4x32xf32>, vector<32x128xf32>, vector<4x128xf32> -> vector<4x128xf32>
    %31 = vector.broadcast %29 : vector<4x1xf32> to vector<4x128xf32>
    %32 = arith.addf %30, %31 : vector<4x128xf32>
    %cst_23 = arith.constant dense<0xFF800000> : vector<128xf32>
    %33 = vector.multi_reduction <maximumf>, %32, %cst_23 [0] : vector<4x128xf32> to vector<128xf32>
    %34 = vector.shape_cast %33 : vector<128xf32> to vector<1x128xf32>
    %35 = vector.broadcast %34 : vector<1x128xf32> to vector<4x128xf32>
    %36 = arith.subf %32, %35 : vector<4x128xf32>
    %37 = math.exp %36 : vector<4x128xf32>
    %cst_24 = arith.constant dense<0.000000e+00> : vector<128xf32>
    %38 = vector.multi_reduction <add>, %37, %cst_24 [0] : vector<4x128xf32> to vector<128xf32>
    %39 = vector.shape_cast %38 : vector<128xf32> to vector<1x128xf32>
    %40 = vector.broadcast %39 : vector<1x128xf32> to vector<4x128xf32>
    %41 = arith.divf %37, %40 : vector<4x128xf32>
    %c0_25 = arith.constant 0 : index
    %c0_26 = arith.constant 0 : index
    %42 = vector.load %arg10[%c0_25, %c0_26] : memref<4x128xf32, #tpu.memory_space<vmem>>, vector<4x128xf32>
    tpu.vector_store %arg10[%c0_25, %c0_26], %41 {strides = array<i32>} : memref<4x128xf32, #tpu.memory_space<vmem>>, vector<4x128xf32>,
    return
  }
  func.func @transform_0(%arg0: i32) -> (i32, i32) {
    %c0_i32 = arith.constant 0 : i32
    %c0_i32_0 = arith.constant 0 : i32
    return %c0_i32, %arg0 : i32, i32
  }
  func.func @transform_1(%arg0: i32) -> (i32, i32) {
    %c0_i32 = arith.constant 0 : i32
    %c0_i32_0 = arith.constant 0 : i32
    %c0_i32_1 = arith.constant 0 : i32
    return %c0_i32, %c0_i32_0 : i32, i32
  }
  func.func @transform_2(%arg0: i32) -> (i32, i32) {
    %c0_i32 = arith.constant 0 : i32
    %c0_i32_0 = arith.constant 0 : i32
    %c0_i32_1 = arith.constant 0 : i32
    return %c0_i32, %c0_i32_0 : i32, i32
  }
  func.func @transform_3(%arg0: i32) -> (i32, i32) {
    %c0_i32 = arith.constant 0 : i32
    %c0_i32_0 = arith.constant 0 : i32
    %c0_i32_1 = arith.constant 0 : i32
    return %c0_i32, %c0_i32_0 : i32, i32
  }
  func.func @transform_4(%arg0: i32) -> (i32, i32) {
    %c0_i32 = arith.constant 0 : i32
    %c0_i32_0 = arith.constant 0 : i32
    %c0_i32_1 = arith.constant 0 : i32
    return %c0_i32, %c0_i32_0 : i32, i32
  }
  func.func @transform_5(%arg0: i32) -> (i32, i32) {
    %c0_i32 = arith.constant 0 : i32
    %c0_i32_0 = arith.constant 0 : i32
    %c0_i32_1 = arith.constant 0 : i32
    return %c0_i32, %c0_i32_0 : i32, i32
  }
  func.func @transform_6(%arg0: i32) -> (i32, i32) {
    %c0_i32 = arith.constant 0 : i32
    %c0_i32_0 = arith.constant 0 : i32
    %c0_i32_1 = arith.constant 0 : i32
    return %c0_i32, %c0_i32_0 : i32, i32
  }
  func.func @transform_7(%arg0: i32) -> (i32, i32) {
    %c0_i32 = arith.constant 0 : i32
    %c0_i32_0 = arith.constant 0 : i32
    %c0_i32_1 = arith.constant 0 : i32
    return %c0_i32, %c0_i32_0 : i32, i32
  }
  func.func @transform_8(%arg0: i32) -> (i32, i32) {
    %c0_i32 = arith.constant 0 : i32
    %c0_i32_0 = arith.constant 0 : i32
    %c0_i32_1 = arith.constant 0 : i32
    return %c0_i32, %c0_i32_0 : i32, i32
  }
  func.func @transform_9(%arg0: i32) -> (i32, i32) {
    %c0_i32 = arith.constant 0 : i32
    %c0_i32_0 = arith.constant 0 : i32
    return %c0_i32, %arg0 : i32, i32
  }
}

</mosaic_0001>

<llo_original>
// kernel: tpu_custom_call.1
$region0: #{tpu_custom_call.1}
  #allocation0 [shape = 'u32[]', space=smem, size = 0x4, offset = 0x4, fixed_abs, tag = 'smem constant byte address 0x4 - core index']
  #allocation1 [shape = 'u32[72,128]{1,0:T(1,128)}', space=vmem, size = 0x9000, scoped, tag = 'internal scratch']
  %s0 = inlined_call_operand.vmem [shape: f32[16,128], index: 0, kind: input, shape index: {}]
  %s1 = inlined_call_operand.vmem [shape: f32[32,16], index: 1, kind: input, shape index: {}]
  %s2 = inlined_call_operand.vmem [shape: f32[32,1], index: 2, kind: input, shape index: {}]
  %s3 = inlined_call_operand.vmem [shape: f32[32,32], index: 3, kind: input, shape index: {}]
  %s4 = inlined_call_operand.vmem [shape: f32[32,1], index: 4, kind: input, shape index: {}]
  %s5 = inlined_call_operand.vmem [shape: f32[32,32], index: 5, kind: input, shape index: {}]
  %s6 = inlined_call_operand.vmem [shape: f32[32,1], index: 6, kind: input, shape index: {}]
  %s7 = inlined_call_operand.vmem [shape: f32[4,32], index: 7, kind: input, shape index: {}]
  %s8 = inlined_call_operand.vmem [shape: f32[4,1], index: 8, kind: input, shape index: {}]
  %s9 = inlined_call_operand.hbm [shape: f32[4,128], index: 9, kind: output, shape index: {}]
  %s10 = sld [smem:[#allocation0]]
  $region46: #{tpu_custom_call.1} parent=0
    _
  %s12 = ssub.s32 1, %s10
  %s13 = scalar_select 0, %s12, %s10
  $region1: #{tpu_custom_call.1} parent=0
    #allocation2 [shape = 'u8[2048]{0}', space=vmem, size = 0x800, scoped, tag = 'output window, operand 0, single buffered']
    #allocation3 [shape = 's32[1]{0}', space=sflag, size = 0x4, scoped, tag = 'scoped memory for tpu_custom_call.1']
    %14 = vsyncpa [#allocation3], 0
    // Predicated region
    $region2: #{tpu_custom_call.1} parent=1 // pred_check
      _
    $region3: #{tpu_custom_call.1} parent=1 // pred_check_branch
      %16 = sbr.rel (0) target = $region5
    $region4: #{tpu_custom_call.1} parent=1 // pred_region
      _
    $region5: #{tpu_custom_call.1} parent=1 // pred_fallthru
      _
    // Predicated region
    $region6: #{tpu_custom_call.1} parent=1 // pred_check
      _
    $region7: #{tpu_custom_call.1} parent=1 // pred_check_branch
      %18 = sbr.rel (0) target = $region9
    $region8: #{tpu_custom_call.1} parent=1 // pred_region
      _
    $region9: #{tpu_custom_call.1} parent=1 // pred_fallthru
      _
    // Predicated region
    $region10: #{tpu_custom_call.1} parent=1 // pred_check
      _
    $region11: #{tpu_custom_call.1} parent=1 // pred_check_branch
      %20 = sbr.rel (0) target = $region13
    $region12: #{tpu_custom_call.1} parent=1 // pred_region
      _
    $region13: #{tpu_custom_call.1} parent=1 // pred_fallthru
      _
    // Predicated region
    $region14: #{tpu_custom_call.1} parent=1 // pred_check
      _
    $region15: #{tpu_custom_call.1} parent=1 // pred_check_branch
      %22 = sbr.rel (0) target = $region17
    $region16: #{tpu_custom_call.1} parent=1 // pred_region
      _
    $region17: #{tpu_custom_call.1} parent=1 // pred_fallthru
      _
    // Predicated region
    $region18: #{tpu_custom_call.1} parent=1 // pred_check
      _
    $region19: #{tpu_custom_call.1} parent=1 // pred_check_branch
      %24 = sbr.rel (0) target = $region21
    $region20: #{tpu_custom_call.1} parent=1 // pred_region
      _
    $region21: #{tpu_custom_call.1} parent=1 // pred_fallthru
      _
    // Predicated region
    $region22: #{tpu_custom_call.1} parent=1 // pred_check
      _
    $region23: #{tpu_custom_call.1} parent=1 // pred_check_branch
      %26 = sbr.rel (0) target = $region25
    $region24: #{tpu_custom_call.1} parent=1 // pred_region
      _
    $region25: #{tpu_custom_call.1} parent=1 // pred_fallthru
      _
    // Predicated region
    $region26: #{tpu_custom_call.1} parent=1 // pred_check
      _
    $region27: #{tpu_custom_call.1} parent=1 // pred_check_branch
      %28 = sbr.rel (0) target = $region29
    $region28: #{tpu_custom_call.1} parent=1 // pred_region
      _
    $region29: #{tpu_custom_call.1} parent=1 // pred_fallthru
      _
    // Predicated region
    $region30: #{tpu_custom_call.1} parent=1 // pred_check
      _
    $region31: #{tpu_custom_call.1} parent=1 // pred_check_branch
      %30 = sbr.rel (0) target = $region33
    $region32: #{tpu_custom_call.1} parent=1 // pred_region
      _
    $region33: #{tpu_custom_call.1} parent=1 // pred_fallthru
      _
    // Predicated region
    $region34: #{tpu_custom_call.1} parent=1 // pred_check
      _
    $region35: #{tpu_custom_call.1} parent=1 // pred_check_branch
      %32 = sbr.rel (0) target = $region37
    $region36: #{tpu_custom_call.1} parent=1 // pred_region
      _
    $region37: #{tpu_custom_call.1} parent=1 // pred_fallthru
      _
    %v33 = vld [vmem:[%s0] sm:$0xff]
    %v34 = vld [vmem:[%s0 + $0x8] sm:$0xff]
    %v35 = vld [vmem:[%s1] sm:$0xff]
    %v36 = vld [vmem:[%s1 + $0x8] sm:$0xff]
    %v37 = vld [vmem:[%s1 + $0x10] sm:$0xff]
    %v38 = vld [vmem:[%s1 + $0x18] sm:$0xff]
    %v39 = vld [vmem:[%s2] sm:$0xff]
    %v40 = vld [vmem:[%s2 + $0x8] sm:$0xff]
    %v41 = vld [vmem:[%s2 + $0x10] sm:$0xff]
    %v42 = vld [vmem:[%s2 + $0x18] sm:$0xff]
    %44 = vset.pattern.permute.xlu0 0
    %45 = vperm.xlu0 %44, %v39
    %v46 = vpop.permute.xlu0 %45
    %49 = vset.pattern.permute.xlu0 0
    %50 = vperm.xlu0 %49, %v40
    %v51 = vpop.permute.xlu0 %50
    %54 = vset.pattern.permute.xlu0 0
    %55 = vperm.xlu0 %54, %v41
    %v56 = vpop.permute.xlu0 %55
    %59 = vset.pattern.permute.xlu0 0
    %60 = vperm.xlu0 %59, %v42
    %v61 = vpop.permute.xlu0 %60
    %vm63 = vcmask 130048
    %v65 = vsel %vm63, %v35, 0
    %v68 = vsel %vm63, %v36, 0
    %v71 = vsel %vm63, %v37, 0
    %v74 = vsel %vm63, %v38, 0
    %76 = vmatpush.msra.mxu0 0.0
    %77 = vmatpush.msra.mxu0 0.0
    %78 = vmatpush.msra.mxu0 0.0
    %79 = vmatpush.msra.mxu0 0.0
    %80 = vmatpush.msra.mxu0 0.0
    %81 = vmatpush.msra.mxu0 0.0
    %82 = vmatpush.msra.mxu0 0.0
    %83 = vmatpush.msra.mxu0 0.0
    %84 = vmatpush.msra.mxu0 0.0
    %85 = vmatpush.msra.mxu0 0.0
    %86 = vmatpush.msra.mxu0 0.0
    %87 = vmatpush.msra.mxu0 0.0
    %88 = vmatpush.msra.mxu0 0.0
    %89 = vmatpush.msra.mxu0 0.0
    %90 = vmatpush.msra.mxu0 %v34
    %91 = vmatpush.msra.mxu0 %v33
    %92 = vmatmul.f32.gmra.mxu0 %v65
    %v93 = vpop.f32.mrf.mxu0
    %v94 = vadd.f32 %v46, %v93
    %95 = vmatmul.f32.gmra.mxu0 %v68
    %v96 = vpop.f32.mrf.mxu0
    %v97 = vadd.f32 %v51, %v96
    %98 = vmatmul.f32.gmra.mxu0 %v71
    %v99 = vpop.f32.mrf.mxu0
    %v100 = vadd.f32 %v56, %v99
    %101 = vmatmul.f32.gmra.mxu0 %v74
    %v102 = vpop.f32.mrf.mxu0
    %v103 = vadd.f32 %v61, %v102
    %104 = vdwg.mxu0
    %v105 = vmax.f32 %v94, 0.0
    %v106 = vmax.f32 %v97, 0.0
    %v107 = vmax.f32 %v100, 0.0
    %v108 = vmax.f32 %v103, 0.0
    %v109 = vld [vmem:[%s3] sm:$0xff]
    %v110 = vld [vmem:[%s3 + $0x8] sm:$0xff]
    %v111 = vld [vmem:[%s3 + $0x10] sm:$0xff]
    %v112 = vld [vmem:[%s3 + $0x18] sm:$0xff]
    %v113 = vld [vmem:[%s4] sm:$0xff]
    %v114 = vld [vmem:[%s4 + $0x8] sm:$0xff]
    %v115 = vld [vmem:[%s4 + $0x10] sm:$0xff]
    %v116 = vld [vmem:[%s4 + $0x18] sm:$0xff]
    %118 = vset.pattern.permute.xlu0 0
    %119 = vperm.xlu0 %118, %v113
    %v120 = vpop.permute.xlu0 %119
    %123 = vset.pattern.permute.xlu0 0
    %124 = vperm.xlu0 %123, %v114
    %v125 = vpop.permute.xlu0 %124
    %128 = vset.pattern.permute.xlu0 0
    %129 = vperm.xlu0 %128, %v115
    %v130 = vpop.permute.xlu0 %129
    %133 = vset.pattern.permute.xlu0 0
    %134 = vperm.xlu0 %133, %v116
    %v135 = vpop.permute.xlu0 %134
    %vm137 = vcmask 261120
    %v139 = vsel %vm137, %v109, 0
    %v142 = vsel %vm137, %v110, 0
    %v145 = vsel %vm137, %v111, 0
    %v148 = vsel %vm137, %v112, 0
    %150 = vmatpush.msra.mxu0 0.0
    %151 = vmatpush.msra.mxu0 0.0
    %152 = vmatpush.msra.mxu0 0.0
    %153 = vmatpush.msra.mxu0 0.0
    %154 = vmatpush.msra.mxu0 0.0
    %155 = vmatpush.msra.mxu0 0.0
    %156 = vmatpush.msra.mxu0 0.0
    %157 = vmatpush.msra.mxu0 0.0
    %158 = vmatpush.msra.mxu0 0.0
    %159 = vmatpush.msra.mxu0 0.0
    %160 = vmatpush.msra.mxu0 0.0
    %161 = vmatpush.msra.mxu0 0.0
    %162 = vmatpush.msra.mxu0 %v108
    %163 = vmatpush.msra.mxu0 %v107
    %164 = vmatpush.msra.mxu0 %v106
    %165 = vmatpush.msra.mxu0 %v105
    %166 = vmatmul.f32.gmra.mxu0 %v139
    %v167 = vpop.f32.mrf.mxu0
    %v168 = vadd.f32 %v120, %v167
    %169 = vmatmul.f32.gmra.mxu0 %v142
    %v170 = vpop.f32.mrf.mxu0
    %v171 = vadd.f32 %v125, %v170
    %172 = vmatmul.f32.gmra.mxu0 %v145
    %v173 = vpop.f32.mrf.mxu0
    %v174 = vadd.f32 %v130, %v173
    %175 = vmatmul.f32.gmra.mxu0 %v148
    %v176 = vpop.f32.mrf.mxu0
    %v177 = vadd.f32 %v135, %v176
    %178 = vdwg.mxu0
    %v179 = vtanh.pop %v168
    %v180 = vtanh.pop %v171
    %v181 = vtanh.pop %v174
    %v182 = vtanh.pop %v177
    %v183 = vld [vmem:[%s5] sm:$0xff]
    %v184 = vld [vmem:[%s5 + $0x8] sm:$0xff]
    %v185 = vld [vmem:[%s5 + $0x10] sm:$0xff]
    %v186 = vld [vmem:[%s5 + $0x18] sm:$0xff]
    %v187 = vld [vmem:[%s6] sm:$0xff]
    %v188 = vld [vmem:[%s6 + $0x8] sm:$0xff]
    %v189 = vld [vmem:[%s6 + $0x10] sm:$0xff]
    %v190 = vld [vmem:[%s6 + $0x18] sm:$0xff]
    %192 = vset.pattern.permute.xlu0 0
    %193 = vperm.xlu0 %192, %v187
    %v194 = vpop.permute.xlu0 %193
    %197 = vset.pattern.permute.xlu0 0
    %198 = vperm.xlu0 %197, %v188
    %v199 = vpop.permute.xlu0 %198
    %202 = vset.pattern.permute.xlu0 0
    %203 = vperm.xlu0 %202, %v189
    %v204 = vpop.permute.xlu0 %203
    %207 = vset.pattern.permute.xlu0 0
    %208 = vperm.xlu0 %207, %v190
    %v209 = vpop.permute.xlu0 %208
    %v212 = vsel %vm137, %v183, 0
    %v215 = vsel %vm137, %v184, 0
    %v218 = vsel %vm137, %v185, 0
    %v221 = vsel %vm137, %v186, 0
    %223 = vmatpush.msra.mxu0 0.0
    %224 = vmatpush.msra.mxu0 0.0
    %225 = vmatpush.msra.mxu0 0.0
    %226 = vmatpush.msra.mxu0 0.0
    %227 = vmatpush.msra.mxu0 0.0
    %228 = vmatpush.msra.mxu0 0.0
    %229 = vmatpush.msra.mxu0 0.0
    %230 = vmatpush.msra.mxu0 0.0
    %231 = vmatpush.msra.mxu0 0.0
    %232 = vmatpush.msra.mxu0 0.0
    %233 = vmatpush.msra.mxu0 0.0
    %234 = vmatpush.msra.mxu0 0.0
    %235 = vmatpush.msra.mxu0 %v182
    %236 = vmatpush.msra.mxu0 %v181
    %237 = vmatpush.msra.mxu0 %v180
    %238 = vmatpush.msra.mxu0 %v179
    %239 = vmatmul.f32.gmra.mxu0 %v212
    %v240 = vpop.f32.mrf.mxu0
    %v241 = vadd.f32 %v194, %v240
    %242 = vmatmul.f32.gmra.mxu0 %v215
    %v243 = vpop.f32.mrf.mxu0
    %v244 = vadd.f32 %v199, %v243
    %245 = vmatmul.f32.gmra.mxu0 %v218
    %v246 = vpop.f32.mrf.mxu0
    %v247 = vadd.f32 %v204, %v246
    %248 = vmatmul.f32.gmra.mxu0 %v221
    %v249 = vpop.f32.mrf.mxu0
    %v250 = vadd.f32 %v209, %v249
    %251 = vdwg.mxu0
    %v252 = vmax.f32 %v241, %v244
    %v253 = vmax.f32 %v247, %v250
    %v254 = vmax.f32 %v252, %v253
    %v255 = vrot.slane %v254, 4
    %v256 = vmax.f32 %v254, %v255
    %v257 = vrot.slane %v256, 2
    %v258 = vmax.f32 %v256, %v257
    %v259 = vrot.slane %v258, 1
    %v260 = vmax.f32 %v258, %v259
    %v261 = vsub.f32 %v241, %v260
    %v262 = vsub.f32 %v244, %v260
    %v263 = vsub.f32 %v247, %v260
    %v264 = vsub.f32 %v250, %v260
    %v265 = vmul.f32 %v261, 1.442695
    %v266 = vpow.pop %v265
    %v267 = vmul.f32 %v262, 1.442695
    %v268 = vpow.pop %v267
    %v269 = vmul.f32 %v263, 1.442695
    %v270 = vpow.pop %v269
    %v271 = vmul.f32 %v264, 1.442695
    %v272 = vpow.pop %v271
    %v273 = vadd.f32 %v266, %v268
    %v274 = vadd.f32 %v273, %v270
    %v275 = vadd.f32 %v274, %v272
    %v276 = vrot.slane %v275, 4
    %v277 = vadd.f32 %v275, %v276
    %v278 = vrot.slane %v277, 2
    %v279 = vadd.f32 %v277, %v278
    %v280 = vrot.slane %v279, 1
    %v281 = vadd.f32 %v279, %v280
    %v282 = vrcp.pop %v281
    %v283 = vmul.f32 %v281, %v282
    %v284 = vsub.f32 1.0, %v283
    %v285 = vmul.f32 %v282, %v284
    %v286 = vadd.f32 %v282, %v285
    %vm287 = vweird.f32 %v281
    %vm288 = vweird.f32 %v282
    %vm289 = vmor %vm287, %vm288
    %v290 = vsel %vm289, %v282, %v286
    %v291 = vand.u32 2147483647, %v281
    %vm292 = vcmp.eq.f32.partialorder %v291, 8.507059e+37
    %v293 = vand.u32 %v281, 2147483648
    %v294 = vor.u32 1.1754944e-38, %v293
    %v295 = vsel %vm292, %v294, %v290
    %v296 = vmul.f32 %v266, %v295
    %v297 = vmul.f32 %v268, %v295
    %v298 = vmul.f32 %v270, %v295
    %v299 = vmul.f32 %v272, %v295
    %v300 = vld [vmem:[%s7] sm:$0xf]
    %v301 = vld [vmem:[%s8] sm:$0xf]
    %303 = vset.pattern.permute.xlu0 0
    %304 = vperm.xlu0 %303, %v301
    %v305 = vpop.permute.xlu0 %304
    %v308 = vsel %vm137, %v300, 0
    %310 = vmatpush.msra.mxu0 0.0
    %311 = vmatpush.msra.mxu0 0.0
    %312 = vmatpush.msra.mxu0 0.0
    %313 = vmatpush.msra.mxu0 0.0
    %314 = vmatpush.msra.mxu0 0.0
    %315 = vmatpush.msra.mxu0 0.0
    %316 = vmatpush.msra.mxu0 0.0
    %317 = vmatpush.msra.mxu0 0.0
    %318 = vmatpush.msra.mxu0 0.0
    %319 = vmatpush.msra.mxu0 0.0
    %320 = vmatpush.msra.mxu0 0.0
    %321 = vmatpush.msra.mxu0 0.0
    %322 = vmatpush.msra.mxu0 %v299
    %323 = vmatpush.msra.mxu0 %v298
    %324 = vmatpush.msra.mxu0 %v297
    %325 = vmatpush.msra.mxu0 %v296
    %326 = vmatmul.f32.gmra.mxu0 %v308
    %v327 = vpop.f32.mrf.mxu0
    %v328 = vadd.f32 %v305, %v327
    %329 = vdwg.mxu0
    %vm330 = vcmask 1043456
    %v331 = vsel %vm330, %v328, -inf
    %v332 = vrot.slane %v331, 4
    %v333 = vmax.f32 %v331, %v332
    %v334 = vrot.slane %v333, 2
    %v335 = vmax.f32 %v333, %v334
    %v336 = vrot.slane %v335, 1
    %v337 = vmax.f32 %v335, %v336
    %v338 = vsub.f32 %v328, %v337
    %v339 = vmul.f32 %v338, 1.442695
    %v340 = vpow.pop %v339
    %v341 = vsel %vm330, %v340, 0.0
    %v342 = vrot.slane %v341, 4
    %v343 = vadd.f32 %v341, %v342
    %v344 = vrot.slane %v343, 2
    %v345 = vadd.f32 %v343, %v344
    %v346 = vrot.slane %v345, 1
    %v347 = vadd.f32 %v345, %v346
    %v348 = vrcp.pop %v347
    %v349 = vmul.f32 %v347, %v348
    %v350 = vsub.f32 1.0, %v349
    %v351 = vmul.f32 %v348, %v350
    %v352 = vadd.f32 %v348, %v351
    %vm353 = vweird.f32 %v347
    %vm354 = vweird.f32 %v348
    %vm355 = vmor %vm353, %vm354
    %v356 = vsel %vm355, %v348, %v352
    %v357 = vand.u32 2147483647, %v347
    %vm358 = vcmp.eq.f32.partialorder %v357, 8.507059e+37
    %v359 = vand.u32 %v347, 2147483648
    %v360 = vor.u32 1.1754944e-38, %v359
    %v361 = vsel %vm358, %v360, %v356
    %v362 = vmul.f32 %v340, %v361
    %363 = vst [vmem:[#allocation2] sm:$0xf] %v362
    // Predicated region
    $region38: #{tpu_custom_call.1} parent=1 // pred_check
      _
    $region39: #{tpu_custom_call.1} parent=1 // pred_check_branch
      %365 = sbr.rel (0) target = $region41
    $region40: #{tpu_custom_call.1} parent=1 // pred_region
      %367 = vsyncadd [#allocation3], 0
      %s369 = sshll.u32 [#allocation2], 4
      %s370 = int_to_ptr.vmem [resolvable:$true] %s369
      %s371 = sshll.u32 %s9, 4
      %s372 = int_to_ptr.hbm [resolvable:$true] %s371
      %374 = dma.vmem_to_hbm [thread:$0]  %s370, 64, %s372, [#allocation3]
    $region41: #{tpu_custom_call.1} parent=1 // pred_fallthru
      _
    // Predicated region
    $region42: #{tpu_custom_call.1} parent=1 // pred_check
      _
    $region43: #{tpu_custom_call.1} parent=1 // pred_check_branch
      %376 = sbr.rel (0) target = $region45
    $region44: #{tpu_custom_call.1} parent=1 // pred_region
      %378 = dma.done [#allocation3], 64
    $region45: #{tpu_custom_call.1} parent=1 // pred_fallthru
      _
    %379 = vsyncpa [#allocation3], 1

</llo_original>
